<compile_context>
chip_gen: v6e
topology: v6e:2x2x1
jax: 0.10.0
libtpu: 0.0.40
codegen_flags: <defaults>
</compile_context>

<pallas_src>
import functools

import jax
import jax.numpy as jnp
from jax.experimental import pallas as pl
from jax.experimental.pallas import tpu as pltpu

LN_EPS = 1e-5   # nn.LayerNorm default
LANE = 128


def _round_up(n, m):
    return pl.cdiv(n, m) * m


def _ln_normalize(h):
    # LayerNorm without affine (affine folded into the next Linear).
    # Two independent XLU reductions; clamp variance against f32 cancellation.
    inv_n = 1.0 / h.shape[-1]
    mu = jnp.sum(h, axis=-1, keepdims=True) * inv_n
    ms = jnp.sum(h * h, axis=-1, keepdims=True) * inv_n
    var = jnp.maximum(ms - mu * mu, 0.0)
    return (h - mu) * jax.lax.rsqrt(var + LN_EPS)


def actor_kernel(x_ref, w1_ref, b1_ref, w2_ref, b2_ref, w3_ref, b3_ref,
                 out_ref, *, max_action):
    # Layer 1: Linear -> ReLU -> LayerNorm (affine folded into W2/b2)
    h = jnp.dot(x_ref[...], w1_ref[...], preferred_element_type=jnp.float32)
    h = jnp.maximum(h + b1_ref[...], 0.0)
    h = _ln_normalize(h)

    # Layer 2: Linear -> ReLU -> LayerNorm (affine folded into W3/b3)
    h = jnp.dot(h.astype(jnp.bfloat16), w2_ref[...],
                preferred_element_type=jnp.float32)
    h = jnp.maximum(h + b2_ref[...], 0.0)
    h = _ln_normalize(h)

    # Action head: Linear -> tanh -> scale (padded lanes carry tanh(0)=0).
    a = jnp.dot(h.astype(jnp.bfloat16), w3_ref[...],
                preferred_element_type=jnp.float32)
    out_ref[...] = max_action * jnp.tanh(a + b3_ref[...])


def actor_forward(x, params, max_action, act_dim, *, block_m=1024):
    """Batch-tiled 1-D grid; weights stay VMEM-resident (constant index_map).

    Tile selection: use the largest tile that the batch allows (grid-step
    overhead dominates this tiny MLP on every TPU generation; bm only needs
    to be a multiple of 8 — the MXU streams M in 8-row strips), but keep at
    least 2 grid steps when batch >= 16 so the "parallel" grid axis can shard
    across both v7x TensorCores.  VMEM stays small (<~4 MiB at bm=1024)."""
    batch, obs_dim = x.shape
    obs_pad = params["w1"].shape[0]
    act_pad = params["w3"].shape[1]

    padded8 = _round_up(batch, 8)
    bm = min(block_m, padded8)
    if padded8 // bm < 2 and padded8 >= 16:
        bm = _round_up(pl.cdiv(padded8, 2), 8)   # >=2 tiles for megacore
    padded = _round_up(batch, bm)

    # Lane-dense bf16 input: pad rows (independent) and obs lanes (zeros pair
    # with zero-padded rows of w1), cast once here instead of per tile.
    x = jnp.pad(x, ((0, padded - batch), (0, obs_pad - obs_dim)))
    x = x.astype(jnp.bfloat16)

    def resident(arr):
        # Full-array block, same block every grid step -> stays in VMEM.
        return pl.BlockSpec(arr.shape, lambda i: (0, 0))

    out = pl.pallas_call(
        functools.partial(actor_kernel, max_action=max_action),
        out_shape=jax.ShapeDtypeStruct((padded, act_pad), jnp.float32),
        grid_spec=pltpu.PrefetchScalarGridSpec(
            num_scalar_prefetch=0,
            grid=(padded // bm,),
            in_specs=[
                pl.BlockSpec((bm, obs_pad), lambda i: (i, 0)),   # x, tiled
                resident(params["w1"]), resident(params["b1"]),
                resident(params["w2"]), resident(params["b2"]),
                resident(params["w3"]), resident(params["b3"]),
            ],
            out_specs=pl.BlockSpec((bm, act_pad), lambda i: (i, 0)),
        ),
        compiler_params=pltpu.CompilerParams(
            dimension_semantics=("parallel",)),   # megacore sharding on v7x
    )(x, params["w1"], params["b1"], params["w2"], params["b2"],
      params["w3"], params["b3"])
    return out[:batch, :act_dim]


def init_raw_params(key, obs_dim, act_dim):
    """f32 parameters in PyTorch layout: Linear weight [out, in], bias [out];
    LayerNorm gamma/beta [H].  ortho_init gains: relu for feature layers,
    tanh for the action head, constant_bias = 0."""
    k1, k2, k3 = jax.random.split(key, 3)
    ortho = jax.nn.initializers.orthogonal
    relu_gain = jnp.sqrt(2.0)
    tanh_gain = 5.0 / 3.0
    return {
        "w1": ortho(scale=relu_gain)(k1, (400, obs_dim), jnp.float32),
        "b1": jnp.zeros((400,), jnp.float32),
        "g1": jnp.ones((400,), jnp.float32),
        "be1": jnp.zeros((400,), jnp.float32),
        "w2": ortho(scale=relu_gain)(k2, (300, 400), jnp.float32),
        "b2": jnp.zeros((300,), jnp.float32),
        "g2": jnp.ones((300,), jnp.float32),
        "be2": jnp.zeros((300,), jnp.float32),
        "w3": ortho(scale=tanh_gain)(k3, (act_dim, 300), jnp.float32),
        "b3": jnp.zeros((act_dim,), jnp.float32),
    }


def prepare_params(raw):
    """One-time kernel parameter prep (all folding in f32, then cast):
      * transpose Linear weights to [in, out] so the kernel does y = x @ W + b
      * fold LayerNorm affines into the next Linear:
            W2' = diag(g1) @ W2^T,  b2' = be1 @ W2^T + b2   (same for LN2->W3)
      * zero-pad obs_dim / act_dim up to multiples of 128 lanes
      * weights -> bf16 (MXU inputs); biases stay f32."""
    obs_dim = raw["w1"].shape[1]
    act_dim = raw["w3"].shape[0]
    obs_pad = _round_up(obs_dim, LANE)
    act_pad = _round_up(act_dim, LANE)

    w1 = jnp.pad(raw["w1"].T, ((0, obs_pad - obs_dim), (0, 0)))
    b1 = raw["b1"]

    w2 = raw["g1"][:, None] * raw["w2"].T
    b2 = raw["be1"] @ raw["w2"].T + raw["b2"]

    w3 = raw["g2"][:, None] * raw["w3"].T
    b3 = raw["be2"] @ raw["w3"].T + raw["b3"]
    w3 = jnp.pad(w3, ((0, 0), (0, act_pad - act_dim)))
    b3 = jnp.pad(b3, (0, act_pad - act_dim))

    return {
        "w1": w1.astype(jnp.bfloat16), "b1": b1[None, :].astype(jnp.float32),
        "w2": w2.astype(jnp.bfloat16), "b2": b2[None, :].astype(jnp.float32),
        "w3": w3.astype(jnp.bfloat16), "b3": b3[None, :].astype(jnp.float32),
    }


def actor_ref_kernel_math(x, params, max_action, act_dim):
    """Pure-JAX mirror of the kernel math (folded params, bf16 matmul inputs,
    f32 accumulation, clamped one-pass variance) — tight correctness check."""
    obs_pad = params["w1"].shape[0]
    xb = jnp.pad(x, ((0, 0), (0, obs_pad - x.shape[1]))).astype(jnp.bfloat16)

    def ln(h):
        inv_n = 1.0 / h.shape[-1]
        mu = jnp.sum(h, axis=-1, keepdims=True) * inv_n
        ms = jnp.sum(h * h, axis=-1, keepdims=True) * inv_n
        return (h - mu) * jax.lax.rsqrt(jnp.maximum(ms - mu * mu, 0.0) + LN_EPS)

    def dot16(a, w):
        return jnp.dot(a.astype(jnp.bfloat16), w,
                       preferred_element_type=jnp.float32)

    h = ln(jnp.maximum(dot16(xb, params["w1"]) + params["b1"], 0.0))
    h = ln(jnp.maximum(dot16(h, params["w2"]) + params["b2"], 0.0))
    a = dot16(h, params["w3"]) + params["b3"]
    return (max_action * jnp.tanh(a))[:, :act_dim]


def actor_ref_module(x, raw, max_action):
    """Unfolded f32 reference following the PyTorch module math exactly."""
    def ln(h, g, b):
        mu = jnp.mean(h, axis=-1, keepdims=True)
        var = jnp.mean(jnp.square(h - mu), axis=-1, keepdims=True)
        return (h - mu) / jnp.sqrt(var + LN_EPS) * g + b

    h = ln(jnp.maximum(x @ raw["w1"].T + raw["b1"], 0.0), raw["g1"], raw["be1"])
    h = ln(jnp.maximum(h @ raw["w2"].T + raw["b2"], 0.0), raw["g2"], raw["be2"])
    return max_action * jnp.tanh(h @ raw["w3"].T + raw["b3"])


if __name__ == "__main__":
    key = jax.random.PRNGKey(0)
    (k_param, k_x, k_b1, k_g1, k_be1,
     k_b2, k_g2, k_be2, k_b3) = jax.random.split(key, 9)

    batch, obs_dim, act_dim = 8, 16, 4
    max_action = 2.0

    raw = init_raw_params(k_param, obs_dim, act_dim)
    # Perturb biases / LayerNorm affine so the folded path is exercised
    # non-trivially (the module's own init would make them trivially 0 / 1).
    raw["b1"] = raw["b1"] + 0.1 * jax.random.normal(k_b1, raw["b1"].shape)
    raw["g1"] = raw["g1"] + 0.1 * jax.random.normal(k_g1, raw["g1"].shape)
    raw["be1"] = raw["be1"] + 0.1 * jax.random.normal(k_be1, raw["be1"].shape)
    raw["b2"] = raw["b2"] + 0.1 * jax.random.normal(k_b2, raw["b2"].shape)
    raw["g2"] = raw["g2"] + 0.1 * jax.random.normal(k_g2, raw["g2"].shape)
    raw["be2"] = raw["be2"] + 0.1 * jax.random.normal(k_be2, raw["be2"].shape)
    raw["b3"] = raw["b3"] + 0.1 * jax.random.normal(k_b3, raw["b3"].shape)

    params = prepare_params(raw)
    x = jax.random.normal(k_x, (batch, obs_dim), jnp.float32)

    out = jax.block_until_ready(actor_forward(x, params, max_action, act_dim))
    assert out.shape == (batch, act_dim)

    # Tight check: kernel vs. pure-JAX mirror of the same (folded, bf16) math.
    ref_k = actor_ref_kernel_math(x, params, max_action, act_dim)
    assert jnp.allclose(out, ref_k, atol=1e-4, rtol=1e-4), \
        "mismatch vs kernel-math reference"

    # Loose check: kernel vs. the original unfolded f32 module semantics
    # (drift comes only from bf16 weight/activation rounding).
    ref_m = actor_ref_module(x, raw, max_action)
    assert jnp.allclose(out, ref_m, atol=1e-1, rtol=5e-2), \
        "mismatch vs module reference"

    print("KERNEL_OK")
</pallas_src>

<mosaic_0001>
module attributes {stable_mosaic.version = 11 : i64} {
  func.func @actor_kernel(%arg0: i32, %arg1: memref<8x128xbf16, #tpu.memory_space<vmem>>, %arg2: memref<128x400xbf16, #tpu.memory_space<vmem>>, %arg3: memref<1x400xf32, #tpu.memory_space<vmem>>, %arg4: memref<400x300xbf16, #tpu.memory_space<vmem>>, %arg5: memref<1x300xf32, #tpu.memory_space<vmem>>, %arg6: memref<300x128xbf16, #tpu.memory_space<vmem>>, %arg7: memref<1x128xf32, #tpu.memory_space<vmem>>, %arg8: memref<8x128xf32, #tpu.memory_space<vmem>>) attributes {dimension_semantics = [#tpu.dimension_semantics<parallel>], iteration_bounds = array<i64: 1>, scalar_prefetch = 0 : i64, scratch_operands = 0 : i64, tpu.core_type = #tpu.core_type<tc>, window_params = [{transform_indices = @transform_0, window_bounds = array<i64: 8, 128>}, {pipeline_mode = #tpu.pipeline_mode<synchronous>, transform_indices = @transform_1, window_bounds = array<i64: 128, 400>}, {pipeline_mode = #tpu.pipeline_mode<synchronous>, transform_indices = @transform_2, window_bounds = array<i64: 1, 400>}, {pipeline_mode = #tpu.pipeline_mode<synchronous>, transform_indices = @transform_3, window_bounds = array<i64: 400, 300>}, {pipeline_mode = #tpu.pipeline_mode<synchronous>, transform_indices = @transform_4, window_bounds = array<i64: 1, 300>}, {pipeline_mode = #tpu.pipeline_mode<synchronous>, transform_indices = @transform_5, window_bounds = array<i64: 300, 128>}, {pipeline_mode = #tpu.pipeline_mode<synchronous>, transform_indices = @transform_6, window_bounds = array<i64: 1, 128>}, {transform_indices = @transform_7, window_bounds = array<i64: 8, 128>}]} {
    %c0 = arith.constant 0 : index
    %c0_0 = arith.constant 0 : index
    %0 = vector.load %arg1[%c0, %c0_0] : memref<8x128xbf16, #tpu.memory_space<vmem>>, vector<8x128xbf16>
    %c0_1 = arith.constant 0 : index
    %c0_2 = arith.constant 0 : index
    %1 = vector.load %arg2[%c0_1, %c0_2] : memref<128x400xbf16, #tpu.memory_space<vmem>>, vector<128x400xbf16>
    %cst = arith.constant dense<0.000000e+00> : vector<8x400xf32>
    %2 = tpu.matmul %0, %1, %cst {dimension_numbers = #tpu.dot_dimension_numbers<[1], [0], [0], [1], [0, 0, 1, 1], [], []>} : vector<8x128xbf16>, vector<128x400xbf16>, vector<8x400xf32> -> vector<8x400xf32>
    %c0_3 = arith.constant 0 : index
    %c0_4 = arith.constant 0 : index
    %3 = vector.load %arg3[%c0_3, %c0_4] : memref<1x400xf32, #tpu.memory_space<vmem>>, vector<1x400xf32>
    %4 = vector.broadcast %3 : vector<1x400xf32> to vector<8x400xf32>
    %5 = arith.addf %2, %4 : vector<8x400xf32>
    %cst_5 = arith.constant 0.000000e+00 : f32
    %6 = vector.broadcast %cst_5 : f32 to vector<8x400xf32>
    %7 = arith.maximumf %5, %6 : vector<8x400xf32>
    %cst_6 = arith.constant dense<0.000000e+00> : vector<8xf32>
    %8 = vector.multi_reduction <add>, %7, %cst_6 [1] : vector<8x400xf32> to vector<8xf32>
    %9 = vector.shape_cast %8 : vector<8xf32> to vector<8x1xf32>
    %cst_7 = arith.constant 2.500000e-03 : f32
    %10 = vector.broadcast %cst_7 : f32 to vector<8x1xf32>
    %11 = arith.mulf %9, %10 : vector<8x1xf32>
    %12 = arith.mulf %7, %7 : vector<8x400xf32>
    %cst_8 = arith.constant dense<0.000000e+00> : vector<8xf32>
    %13 = vector.multi_reduction <add>, %12, %cst_8 [1] : vector<8x400xf32> to vector<8xf32>
    %14 = vector.shape_cast %13 : vector<8xf32> to vector<8x1xf32>
    %cst_9 = arith.constant 2.500000e-03 : f32
    %15 = vector.broadcast %cst_9 : f32 to vector<8x1xf32>
    %16 = arith.mulf %14, %15 : vector<8x1xf32>
    %17 = arith.mulf %11, %11 : vector<8x1xf32>
    %18 = arith.subf %16, %17 : vector<8x1xf32>
    %cst_10 = arith.constant 0.000000e+00 : f32
    %19 = vector.broadcast %cst_10 : f32 to vector<8x1xf32>
    %20 = arith.maximumf %18, %19 : vector<8x1xf32>
    %21 = vector.broadcast %11 : vector<8x1xf32> to vector<8x400xf32>
    %22 = arith.subf %7, %21 : vector<8x400xf32>
    %cst_11 = arith.constant 9.99999974E-6 : f32
    %23 = vector.broadcast %cst_11 : f32 to vector<8x1xf32>
    %24 = arith.addf %20, %23 : vector<8x1xf32>
    %25 = math.rsqrt %24 : vector<8x1xf32>
    %26 = vector.broadcast %25 : vector<8x1xf32> to vector<8x400xf32>
    %27 = arith.mulf %22, %26 : vector<8x400xf32>
    %28 = arith.truncf %27 : vector<8x400xf32> to vector<8x400xbf16>
    %c0_12 = arith.constant 0 : index
    %c0_13 = arith.constant 0 : index
    %29 = vector.load %arg4[%c0_12, %c0_13] : memref<400x300xbf16, #tpu.memory_space<vmem>>, vector<400x300xbf16>
    %cst_14 = arith.constant dense<0.000000e+00> : vector<8x300xf32>
    %30 = tpu.matmul %28, %29, %cst_14 {dimension_numbers = #tpu.dot_dimension_numbers<[1], [0], [0], [1], [0, 0, 1, 1], [], []>} : vector<8x400xbf16>, vector<400x300xbf16>, vector<8x300xf32> -> vector<8x300xf32>
    %c0_15 = arith.constant 0 : index
    %c0_16 = arith.constant 0 : index
    %31 = vector.load %arg5[%c0_15, %c0_16] : memref<1x300xf32, #tpu.memory_space<vmem>>, vector<1x300xf32>
    %32 = vector.broadcast %31 : vector<1x300xf32> to vector<8x300xf32>
    %33 = arith.addf %30, %32 : vector<8x300xf32>
    %cst_17 = arith.constant 0.000000e+00 : f32
    %34 = vector.broadcast %cst_17 : f32 to vector<8x300xf32>
    %35 = arith.maximumf %33, %34 : vector<8x300xf32>
    %cst_18 = arith.constant dense<0.000000e+00> : vector<8xf32>
    %36 = vector.multi_reduction <add>, %35, %cst_18 [1] : vector<8x300xf32> to vector<8xf32>
    %37 = vector.shape_cast %36 : vector<8xf32> to vector<8x1xf32>
    %cst_19 = arith.constant 0.00333333341 : f32
    %38 = vector.broadcast %cst_19 : f32 to vector<8x1xf32>
    %39 = arith.mulf %37, %38 : vector<8x1xf32>
    %40 = arith.mulf %35, %35 : vector<8x300xf32>
    %cst_20 = arith.constant dense<0.000000e+00> : vector<8xf32>
    %41 = vector.multi_reduction <add>, %40, %cst_20 [1] : vector<8x300xf32> to vector<8xf32>
    %42 = vector.shape_cast %41 : vector<8xf32> to vector<8x1xf32>
    %cst_21 = arith.constant 0.00333333341 : f32
    %43 = vector.broadcast %cst_21 : f32 to vector<8x1xf32>
    %44 = arith.mulf %42, %43 : vector<8x1xf32>
    %45 = arith.mulf %39, %39 : vector<8x1xf32>
    %46 = arith.subf %44, %45 : vector<8x1xf32>
    %cst_22 = arith.constant 0.000000e+00 : f32
    %47 = vector.broadcast %cst_22 : f32 to vector<8x1xf32>
    %48 = arith.maximumf %46, %47 : vector<8x1xf32>
    %49 = vector.broadcast %39 : vector<8x1xf32> to vector<8x300xf32>
    %50 = arith.subf %35, %49 : vector<8x300xf32>
    %cst_23 = arith.constant 9.99999974E-6 : f32
    %51 = vector.broadcast %cst_23 : f32 to vector<8x1xf32>
    %52 = arith.addf %48, %51 : vector<8x1xf32>
    %53 = math.rsqrt %52 : vector<8x1xf32>
    %54 = vector.broadcast %53 : vector<8x1xf32> to vector<8x300xf32>
    %55 = arith.mulf %50, %54 : vector<8x300xf32>
    %56 = arith.truncf %55 : vector<8x300xf32> to vector<8x300xbf16>
    %c0_24 = arith.constant 0 : index
    %c0_25 = arith.constant 0 : index
    %57 = vector.load %arg6[%c0_24, %c0_25] : memref<300x128xbf16, #tpu.memory_space<vmem>>, vector<300x128xbf16>
    %cst_26 = arith.constant dense<0.000000e+00> : vector<8x128xf32>
    %58 = tpu.matmul %56, %57, %cst_26 {dimension_numbers = #tpu.dot_dimension_numbers<[1], [0], [0], [1], [0, 0, 1, 1], [], []>} : vector<8x300xbf16>, vector<300x128xbf16>, vector<8x128xf32> -> vector<8x128xf32>
    %c0_27 = arith.constant 0 : index
    %c0_28 = arith.constant 0 : index
    %59 = vector.load %arg7[%c0_27, %c0_28] : memref<1x128xf32, #tpu.memory_space<vmem>>, vector<1x128xf32>
    %60 = vector.broadcast %59 : vector<1x128xf32> to vector<8x128xf32>
    %61 = arith.addf %58, %60 : vector<8x128xf32>
    %62 = math.tanh %61 : vector<8x128xf32>
    %cst_29 = arith.constant 2.000000e+00 : f32
    %63 = vector.broadcast %cst_29 : f32 to vector<8x128xf32>
    %64 = arith.mulf %63, %62 : vector<8x128xf32>
    %c0_30 = arith.constant 0 : index
    %c0_31 = arith.constant 0 : index
    %65 = vector.load %arg8[%c0_30, %c0_31] : memref<8x128xf32, #tpu.memory_space<vmem>>, vector<8x128xf32>
    tpu.vector_store %arg8[%c0_30, %c0_31], %64 {strides = array<i32>} : memref<8x128xf32, #tpu.memory_space<vmem>>, vector<8x128xf32>,
    return
  }
  func.func @transform_0(%arg0: i32) -> (i32, i32) {
    %c0_i32 = arith.constant 0 : i32
    %c0_i32_0 = arith.constant 0 : i32
    return %arg0, %c0_i32 : i32, i32
  }
  func.func @transform_1(%arg0: i32) -> (i32, i32) {
    %c0_i32 = arith.constant 0 : i32
    %c0_i32_0 = arith.constant 0 : i32
    %c0_i32_1 = arith.constant 0 : i32
    return %c0_i32, %c0_i32_0 : i32, i32
  }
  func.func @transform_2(%arg0: i32) -> (i32, i32) {
    %c0_i32 = arith.constant 0 : i32
    %c0_i32_0 = arith.constant 0 : i32
    %c0_i32_1 = arith.constant 0 : i32
    return %c0_i32, %c0_i32_0 : i32, i32
  }
  func.func @transform_3(%arg0: i32) -> (i32, i32) {
    %c0_i32 = arith.constant 0 : i32
    %c0_i32_0 = arith.constant 0 : i32
    %c0_i32_1 = arith.constant 0 : i32
    return %c0_i32, %c0_i32_0 : i32, i32
  }
  func.func @transform_4(%arg0: i32) -> (i32, i32) {
    %c0_i32 = arith.constant 0 : i32
    %c0_i32_0 = arith.constant 0 : i32
    %c0_i32_1 = arith.constant 0 : i32
    return %c0_i32, %c0_i32_0 : i32, i32
  }
  func.func @transform_5(%arg0: i32) -> (i32, i32) {
    %c0_i32 = arith.constant 0 : i32
    %c0_i32_0 = arith.constant 0 : i32
    %c0_i32_1 = arith.constant 0 : i32
    return %c0_i32, %c0_i32_0 : i32, i32
  }
  func.func @transform_6(%arg0: i32) -> (i32, i32) {
    %c0_i32 = arith.constant 0 : i32
    %c0_i32_0 = arith.constant 0 : i32
    %c0_i32_1 = arith.constant 0 : i32
    return %c0_i32, %c0_i32_0 : i32, i32
  }
  func.func @transform_7(%arg0: i32) -> (i32, i32) {
    %c0_i32 = arith.constant 0 : i32
    %c0_i32_0 = arith.constant 0 : i32
    return %arg0, %c0_i32 : i32, i32
  }
}

</mosaic_0001>

<llo_original>
// kernel: tpu_custom_call.1
$region0: #{tpu_custom_call.1}
  #allocation0 [shape = 'u32[]', space=smem, size = 0x4, offset = 0x4, fixed_abs, tag = 'smem constant byte address 0x4 - core index']
  #allocation1 [shape = 'u32[144,128]{1,0:T(1,128)}', space=vmem, size = 0x12000, scoped, tag = 'internal scratch']
  %s0 = inlined_call_operand.vmem [shape: bf16[8,128], index: 0, kind: input, shape index: {}]
  %s1 = inlined_call_operand.vmem [shape: bf16[128,400], index: 1, kind: input, shape index: {}]
  %s2 = inlined_call_operand.vmem [shape: f32[1,400], index: 2, kind: input, shape index: {}]
  %s3 = inlined_call_operand.hbm [shape: bf16[400,300], index: 3, kind: input, shape index: {}]
  %s4 = inlined_call_operand.vmem [shape: f32[1,300], index: 4, kind: input, shape index: {}]
  %s5 = inlined_call_operand.vmem [shape: bf16[300,128], index: 5, kind: input, shape index: {}]
  %s6 = inlined_call_operand.vmem [shape: f32[1,128], index: 6, kind: input, shape index: {}]
  %s7 = inlined_call_operand.hbm [shape: f32[8,128], index: 7, kind: output, shape index: {}]
  %s8 = sld [smem:[#allocation0]]
  $region42: #{tpu_custom_call.1} parent=0
    _
  %s10 = ssub.s32 1, %s8
  %s11 = scalar_select 0, %s10, %s8
  $region1: #{tpu_custom_call.1} parent=0
    #allocation2 [shape = 'u8[307200]{0}', space=vmem, size = 0x4b000, scoped, tag = 'input window, operand 3, single buffered']
    #allocation3 [shape = 's32[1]{0}', space=sflag, size = 0x4, scoped, tag = 'scoped memory for tpu_custom_call.1']
    #allocation4 [shape = 's32[1]{0}', space=sflag, size = 0x4, scoped, tag = 'scoped memory for tpu_custom_call.1']
    #allocation5 [shape = 'u8[4096]{0}', space=vmem, size = 0x1000, scoped, tag = 'output window, operand 0, single buffered']
    %12 = vsyncpa [#allocation3], 0
    %13 = vsyncpa [#allocation4], 0
    // Predicated region
    $region2: #{tpu_custom_call.1} parent=1 // pred_check
      _
    $region3: #{tpu_custom_call.1} parent=1 // pred_check_branch
      %15 = sbr.rel (0) target = $region5
    $region4: #{tpu_custom_call.1} parent=1 // pred_region
      _
    $region5: #{tpu_custom_call.1} parent=1 // pred_fallthru
      _
    // Predicated region
    $region6: #{tpu_custom_call.1} parent=1 // pred_check
      _
    $region7: #{tpu_custom_call.1} parent=1 // pred_check_branch
      %17 = sbr.rel (0) target = $region9
    $region8: #{tpu_custom_call.1} parent=1 // pred_region
      _
    $region9: #{tpu_custom_call.1} parent=1 // pred_fallthru
      _
    // Predicated region
    $region10: #{tpu_custom_call.1} parent=1 // pred_check
      _
    $region11: #{tpu_custom_call.1} parent=1 // pred_check_branch
      %19 = sbr.rel (0) target = $region13
    $region12: #{tpu_custom_call.1} parent=1 // pred_region
      _
    $region13: #{tpu_custom_call.1} parent=1 // pred_fallthru
      _
    // Predicated region
    $region14: #{tpu_custom_call.1} parent=1 // pred_check
      _
    $region15: #{tpu_custom_call.1} parent=1 // pred_check_branch
      %21 = sbr.rel (0) target = $region17
    $region16: #{tpu_custom_call.1} parent=1 // pred_region
      %s23 = ssub.s32 9600, 9600
      %24 = vsyncadd [#allocation3], %s23
      %s25 = sshll.u32 [#allocation2], 4
      %s26 = int_to_ptr.vmem [resolvable:$true] %s25
      %31 = dma.hbm_to_vmem [thread:$0]  %s3, 9600, %s26, [#allocation3], 192, 192, 12
    $region17: #{tpu_custom_call.1} parent=1 // pred_fallthru
      _
    // Predicated region
    $region18: #{tpu_custom_call.1} parent=1 // pred_check
      _
    $region19: #{tpu_custom_call.1} parent=1 // pred_check_branch
      %33 = sbr.rel (0) target = $region21
    $region20: #{tpu_custom_call.1} parent=1 // pred_region
      _
    $region21: #{tpu_custom_call.1} parent=1 // pred_fallthru
      _
    // Predicated region
    $region22: #{tpu_custom_call.1} parent=1 // pred_check
      _
    $region23: #{tpu_custom_call.1} parent=1 // pred_check_branch
      %35 = sbr.rel (0) target = $region25
    $region24: #{tpu_custom_call.1} parent=1 // pred_region
      _
    $region25: #{tpu_custom_call.1} parent=1 // pred_fallthru
      _
    // Predicated region
    $region26: #{tpu_custom_call.1} parent=1 // pred_check
      _
    $region27: #{tpu_custom_call.1} parent=1 // pred_check_branch
      %37 = sbr.rel (0) target = $region29
    $region28: #{tpu_custom_call.1} parent=1 // pred_region
      _
    $region29: #{tpu_custom_call.1} parent=1 // pred_fallthru
      _
    // Predicated region
    $region30: #{tpu_custom_call.1} parent=1 // pred_check
      _
    $region31: #{tpu_custom_call.1} parent=1 // pred_check_branch
      %39 = sbr.rel (0) target = $region33
    $region32: #{tpu_custom_call.1} parent=1 // pred_region
      %40 = dma.done [#allocation3], 9600
    $region33: #{tpu_custom_call.1} parent=1 // pred_fallthru
      _
    %v42 = vld [vmem:[%s0] sm:$0xf]
    %v43 = vld [vmem:[%s1] sm:$0xff]
    %v44 = vld [vmem:[%s1 + $0x8] sm:$0xff]
    %v45 = vld [vmem:[%s1 + $0x10] sm:$0xff]
    %v46 = vld [vmem:[%s1 + $0x18] sm:$0xff]
    %v47 = vld [vmem:[%s1 + $0x20] sm:$0xff]
    %v48 = vld [vmem:[%s1 + $0x28] sm:$0xff]
    %v49 = vld [vmem:[%s1 + $0x30] sm:$0xff]
    %v50 = vld [vmem:[%s1 + $0x38] sm:$0xff]
    %v51 = vld [vmem:[%s1 + $0x40] sm:$0xff]
    %v52 = vld [vmem:[%s1 + $0x48] sm:$0xff]
    %v53 = vld [vmem:[%s1 + $0x50] sm:$0xff]
    %v54 = vld [vmem:[%s1 + $0x58] sm:$0xff]
    %v55 = vld [vmem:[%s1 + $0x60] sm:$0xff]
    %v56 = vld [vmem:[%s1 + $0x68] sm:$0xff]
    %v57 = vld [vmem:[%s1 + $0x70] sm:$0xff]
    %v58 = vld [vmem:[%s1 + $0x78] sm:$0xff]
    %v59 = vld [vmem:[%s1 + $0x80] sm:$0xff]
    %v60 = vld [vmem:[%s1 + $0x88] sm:$0xff]
    %v61 = vld [vmem:[%s1 + $0x90] sm:$0xff]
    %v62 = vld [vmem:[%s1 + $0x98] sm:$0xff]
    %v63 = vld [vmem:[%s1 + $0xa0] sm:$0xff]
    %v64 = vld [vmem:[%s1 + $0xa8] sm:$0xff]
    %v65 = vld [vmem:[%s1 + $0xb0] sm:$0xff]
    %v66 = vld [vmem:[%s1 + $0xb8] sm:$0xff]
    %v67 = vld [vmem:[%s1 + $0xc0] sm:$0xff]
    %v68 = vld [vmem:[%s1 + $0xc8] sm:$0xff]
    %v69 = vld [vmem:[%s1 + $0xd0] sm:$0xff]
    %v70 = vld [vmem:[%s1 + $0xd8] sm:$0xff]
    %v71 = vld [vmem:[%s1 + $0xe0] sm:$0xff]
    %v72 = vld [vmem:[%s1 + $0xe8] sm:$0xff]
    %v73 = vld [vmem:[%s1 + $0xf0] sm:$0xff]
    %v74 = vld [vmem:[%s1 + $0xf8] sm:$0xff]
    %v75 = vld [vmem:[%s2] sm:$0xf]
    %v77 = vlaneseq
    %v78 = vshrl.u32 %v77, 7
    %v79 = vsub.s32 0, %v78
    %v80 = vrot.slane %v75, %v79
    %v81 = vlaneseq
    %v82 = vshrl.u32 %v81, 7
    %v83 = vsub.s32 1, %v82
    %v84 = vrot.slane %v75, %v83
    %v85 = vlaneseq
    %v86 = vshrl.u32 %v85, 7
    %v87 = vsub.s32 2, %v86
    %v88 = vrot.slane %v75, %v87
    %v89 = vlaneseq
    %v90 = vshrl.u32 %v89, 7
    %v91 = vsub.s32 3, %v90
    %v92 = vrot.slane %v75, %v91
    %v129 = vunpack.c.l.b16 %v43
    %v130 = vunpack.c.h.b16 %v43
    %v131 = vunpack.c.l.b16 %v44
    %v132 = vunpack.c.h.b16 %v44
    %v133 = vunpack.c.l.b16 %v45
    %v134 = vunpack.c.h.b16 %v45
    %v135 = vunpack.c.l.b16 %v46
    %v136 = vunpack.c.h.b16 %v46
    %v137 = vunpack.c.l.b16 %v47
    %v138 = vunpack.c.h.b16 %v47
    %v139 = vunpack.c.l.b16 %v48
    %v140 = vunpack.c.h.b16 %v48
    %v141 = vunpack.c.l.b16 %v49
    %v142 = vunpack.c.h.b16 %v49
    %v143 = vunpack.c.l.b16 %v50
    %v144 = vunpack.c.h.b16 %v50
    %v145 = vunpack.c.l.b16 %v51
    %v146 = vunpack.c.h.b16 %v51
    %v147 = vunpack.c.l.b16 %v52
    %v148 = vunpack.c.h.b16 %v52
    %v149 = vunpack.c.l.b16 %v53
    %v150 = vunpack.c.h.b16 %v53
    %v151 = vunpack.c.l.b16 %v54
    %v152 = vunpack.c.h.b16 %v54
    %v153 = vunpack.c.l.b16 %v55
    %v154 = vunpack.c.h.b16 %v55
    %v155 = vunpack.c.l.b16 %v56
    %v156 = vunpack.c.h.b16 %v56
    %v157 = vunpack.c.l.b16 %v57
    %v158 = vunpack.c.h.b16 %v57
    %v159 = vunpack.c.l.b16 %v58
    %v160 = vunpack.c.h.b16 %v58
    %v161 = vunpack.c.l.b16 %v59
    %v162 = vunpack.c.h.b16 %v59
    %v163 = vunpack.c.l.b16 %v60
    %v164 = vunpack.c.h.b16 %v60
    %v165 = vunpack.c.l.b16 %v61
    %v166 = vunpack.c.h.b16 %v61
    %v167 = vunpack.c.l.b16 %v62
    %v168 = vunpack.c.h.b16 %v62
    %v169 = vunpack.c.l.b16 %v63
    %v170 = vunpack.c.h.b16 %v63
    %v171 = vunpack.c.l.b16 %v64
    %v172 = vunpack.c.h.b16 %v64
    %v173 = vunpack.c.l.b16 %v65
    %v174 = vunpack.c.h.b16 %v65
    %v175 = vunpack.c.l.b16 %v66
    %v176 = vunpack.c.h.b16 %v66
    %v177 = vunpack.c.l.b16 %v67
    %v178 = vunpack.c.h.b16 %v67
    %v179 = vunpack.c.l.b16 %v68
    %v180 = vunpack.c.h.b16 %v68
    %v181 = vunpack.c.l.b16 %v69
    %v182 = vunpack.c.h.b16 %v69
    %v183 = vunpack.c.l.b16 %v70
    %v184 = vunpack.c.h.b16 %v70
    %v185 = vunpack.c.l.b16 %v71
    %v186 = vunpack.c.h.b16 %v71
    %v187 = vunpack.c.l.b16 %v72
    %v188 = vunpack.c.h.b16 %v72
    %v189 = vunpack.c.l.b16 %v73
    %v190 = vunpack.c.h.b16 %v73
    %v191 = vunpack.c.l.b16 %v74
    %v192 = vunpack.c.h.b16 %v74
    %v193 = vpack.c.b16 %v133, %v129
    %v194 = vpack.c.b16 %v134, %v130
    %v195 = vpack.c.b16 %v135, %v131
    %v196 = vpack.c.b16 %v136, %v132
    %v197 = vpack.c.b16 %v141, %v137
    %v198 = vpack.c.b16 %v142, %v138
    %v199 = vpack.c.b16 %v143, %v139
    %v200 = vpack.c.b16 %v144, %v140
    %v201 = vpack.c.b16 %v149, %v145
    %v202 = vpack.c.b16 %v150, %v146
    %v203 = vpack.c.b16 %v151, %v147
    %v204 = vpack.c.b16 %v152, %v148
    %v205 = vpack.c.b16 %v157, %v153
    %v206 = vpack.c.b16 %v158, %v154
    %v207 = vpack.c.b16 %v159, %v155
    %v208 = vpack.c.b16 %v160, %v156
    %v209 = vpack.c.b16 %v165, %v161
    %v210 = vpack.c.b16 %v166, %v162
    %v211 = vpack.c.b16 %v167, %v163
    %v212 = vpack.c.b16 %v168, %v164
    %v213 = vpack.c.b16 %v173, %v169
    %v214 = vpack.c.b16 %v174, %v170
    %v215 = vpack.c.b16 %v175, %v171
    %v216 = vpack.c.b16 %v176, %v172
    %v217 = vpack.c.b16 %v181, %v177
    %v218 = vpack.c.b16 %v182, %v178
    %v219 = vpack.c.b16 %v183, %v179
    %v220 = vpack.c.b16 %v184, %v180
    %v221 = vpack.c.b16 %v189, %v185
    %v222 = vpack.c.b16 %v190, %v186
    %v223 = vpack.c.b16 %v191, %v187
    %v224 = vpack.c.b16 %v192, %v188
    %257 = vmatprep.subr.bf16.mxu0 %v222
    %258 = vmatpush1.bf16.msra.mxu0 %v221
    %259 = vmatprep.subr.bf16.mxu0 %v218
    %260 = vmatpush1.bf16.msra.mxu0 %v217
    %261 = vmatprep.subr.bf16.mxu0 %v214
    %262 = vmatpush1.bf16.msra.mxu0 %v213
    %263 = vmatprep.subr.bf16.mxu0 %v210
    %264 = vmatpush1.bf16.msra.mxu0 %v209
    %265 = vmatprep.subr.bf16.mxu0 %v206
    %266 = vmatpush1.bf16.msra.mxu0 %v205
    %267 = vmatprep.subr.bf16.mxu0 %v202
    %268 = vmatpush1.bf16.msra.mxu0 %v201
    %269 = vmatprep.subr.bf16.mxu0 %v198
    %270 = vmatpush1.bf16.msra.mxu0 %v197
    %271 = vmatprep.subr.bf16.mxu0 %v194
    %272 = vmatpush1.bf16.msra.mxu0 %v193
    %273 = vmatprep.subr.bf16.mxu0 0
    %274 = vmatpush2.bf16.msra.mxu0 0
    %275 = vmatprep.subr.bf16.mxu0 0
    %276 = vmatpush2.bf16.msra.mxu0 0
    %277 = vmatprep.subr.bf16.mxu0 0
    %278 = vmatpush2.bf16.msra.mxu0 0
    %279 = vmatprep.subr.bf16.mxu0 0
    %280 = vmatpush2.bf16.msra.mxu0 0
    %281 = vmatprep.subr.bf16.mxu0 0
    %282 = vmatpush2.bf16.msra.mxu0 0
    %283 = vmatprep.subr.bf16.mxu0 0
    %284 = vmatpush2.bf16.msra.mxu0 0
    %285 = vmatprep.subr.bf16.mxu0 0
    %286 = vmatpush2.bf16.msra.mxu0 0
    %287 = vmatprep.subr.bf16.mxu0 0
    %288 = vmatpush2.bf16.msra.mxu0 0
    %289 = vmatprep.mubr.bf16.mxu0 0
    %290 = vmatmul.mubr.bf16.gmra.mxu0 %v42
    %v291 = vpop.f32.mrf.mxu0
    %v292 = vadd.f32 %v80, %v291
    %v293 = vpop.f32.mrf.mxu0
    %v294 = vadd.f32 %v84, %v293
    %v295 = vpop.f32.mrf.mxu0
    %v296 = vpop.f32.mrf.mxu0
    %297 = vdwg.mxu0
    %298 = vmatprep.subr.bf16.mxu0 %v224
    %299 = vmatpush1.bf16.msra.mxu0 %v223
    %300 = vmatprep.subr.bf16.mxu0 %v220
    %301 = vmatpush1.bf16.msra.mxu0 %v219
    %302 = vmatprep.subr.bf16.mxu0 %v216
    %303 = vmatpush1.bf16.msra.mxu0 %v215
    %304 = vmatprep.subr.bf16.mxu0 %v212
    %305 = vmatpush1.bf16.msra.mxu0 %v211
    %306 = vmatprep.subr.bf16.mxu0 %v208
    %307 = vmatpush1.bf16.msra.mxu0 %v207
    %308 = vmatprep.subr.bf16.mxu0 %v204
    %309 = vmatpush1.bf16.msra.mxu0 %v203
    %310 = vmatprep.subr.bf16.mxu0 %v200
    %311 = vmatpush1.bf16.msra.mxu0 %v199
    %312 = vmatprep.subr.bf16.mxu0 %v196
    %313 = vmatpush1.bf16.msra.mxu0 %v195
    %314 = vmatprep.subr.bf16.mxu0 0
    %315 = vmatpush2.bf16.msra.mxu0 0
    %316 = vmatprep.subr.bf16.mxu0 0
    %317 = vmatpush2.bf16.msra.mxu0 0
    %318 = vmatprep.subr.bf16.mxu0 0
    %319 = vmatpush2.bf16.msra.mxu0 0
    %320 = vmatprep.subr.bf16.mxu0 0
    %321 = vmatpush2.bf16.msra.mxu0 0
    %322 = vmatprep.subr.bf16.mxu0 0
    %323 = vmatpush2.bf16.msra.mxu0 0
    %324 = vmatprep.subr.bf16.mxu0 0
    %325 = vmatpush2.bf16.msra.mxu0 0
    %326 = vmatprep.subr.bf16.mxu0 0
    %327 = vmatpush2.bf16.msra.mxu0 0
    %328 = vmatprep.subr.bf16.mxu0 0
    %329 = vmatpush2.bf16.msra.mxu0 0
    %330 = vmatprep.mubr.bf16.mxu0 0
    %331 = vmatmul.mubr.bf16.gmra.mxu0 %v42
    %v332 = vpop.f32.mrf.mxu0
    %v333 = vadd.f32 %v88, %v332
    %v334 = vpop.f32.mrf.mxu0
    %v335 = vadd.f32 %v92, %v334
    %v336 = vpop.f32.mrf.mxu0
    %v337 = vpop.f32.mrf.mxu0
    %338 = vdwg.mxu0
    %v339 = vmax.f32 %v292, 0.0
    %v340 = vmax.f32 %v294, 0.0
    %v341 = vmax.f32 %v333, 0.0
    %v342 = vmax.f32 %v335, 0.0
    %v343 = vadd.f32 %v339, %v340
    %v344 = vadd.f32 %v343, %v341
    %vm345 = vcmask 130048
    %v346 = vsel %vm345, %v342, 0.0
    %v347 = vadd.f32 %v344, %v346
    %348 = vadd.xlane.f32.xlu0 %v347
    %v349 = vpop.xlane.xlu0 %348
    %v350 = vmul.f32 %v349, 0.0025
    %v351 = vmul.f32 %v339, %v339
    %v352 = vmul.f32 %v340, %v340
    %v353 = vmul.f32 %v341, %v341
    %v354 = vmul.f32 %v342, %v342
    %v355 = vadd.f32 %v351, %v352
    %v356 = vadd.f32 %v355, %v353
    %v357 = vsel %vm345, %v354, 0.0
    %v358 = vadd.f32 %v356, %v357
    %359 = vadd.xlane.f32.xlu0 %v358
    %v360 = vpop.xlane.xlu0 %359
    %v361 = vmul.f32 %v360, 0.0025
    %v362 = vmul.f32 %v350, %v350
    %v363 = vsub.f32 %v361, %v362
    %v364 = vmax.f32 %v363, 0.0
    %v365 = vsub.f32 %v339, %v350
    %v366 = vsub.f32 %v340, %v350
    %v367 = vsub.f32 %v341, %v350
    %v368 = vsub.f32 %v342, %v350
    %v369 = vadd.f32 %v364, 1e-05
    %v370 = vrsqrt.pop %v369
    %v371 = vmul.f32 %v365, %v370
    %v372 = vmul.f32 %v366, %v370
    %v373 = vmul.f32 %v367, %v370
    %v374 = vmul.f32 %v368, %v370
    %v375 = vpack.c.bf16 %v371, %v371
    %v376 = vpack.c.bf16 %v372, %v372
    %v377 = vpack.c.bf16 %v373, %v373
    %v378 = vpack.c.bf16 %v374, %v374
    %v379 = vld [vmem:[#allocation2] sm:$0xff]
    %v380 = vld [vmem:[#allocation2 + $0x8] sm:$0xf]
    %v381 = vld [vmem:[#allocation2 + $0xc] sm:$0xff]
    %v382 = vld [vmem:[#allocation2 + $0x14] sm:$0xf]
    %v383 = vld [vmem:[#allocation2 + $0x18] sm:$0xff]
    %v384 = vld [vmem:[#allocation2 + $0x20] sm:$0xf]
    %v385 = vld [vmem:[#allocation2 + $0x24] sm:$0xff]
    %v386 = vld [vmem:[#allocation2 + $0x2c] sm:$0xf]
    %v387 = vld [vmem:[#allocation2 + $0x30] sm:$0xff]
    %v388 = vld [vmem:[#allocation2 + $0x38] sm:$0xf]
    %v389 = vld [vmem:[#allocation2 + $0x3c] sm:$0xff]
    %v390 = vld [vmem:[#allocation2 + $0x44] sm:$0xf]
    %v391 = vld [vmem:[#allocation2 + $0x48] sm:$0xff]
    %v392 = vld [vmem:[#allocation2 + $0x50] sm:$0xf]
    %v393 = vld [vmem:[#allocation2 + $0x54] sm:$0xff]
    %v394 = vld [vmem:[#allocation2 + $0x5c] sm:$0xf]
    %v395 = vld [vmem:[#allocation2 + $0x60] sm:$0xff]
    %v396 = vld [vmem:[#allocation2 + $0x68] sm:$0xf]
    %v397 = vld [vmem:[#allocation2 + $0x6c] sm:$0xff]
    %v398 = vld [vmem:[#allocation2 + $0x74] sm:$0xf]
    %v399 = vld [vmem:[#allocation2 + $0x78] sm:$0xff]
    %v400 = vld [vmem:[#allocation2 + $0x80] sm:$0xf]
    %v401 = vld [vmem:[#allocation2 + $0x84] sm:$0xff]
    %v402 = vld [vmem:[#allocation2 + $0x8c] sm:$0xf]
    %v403 = vld [vmem:[#allocation2 + $0x90] sm:$0xff]
    %v404 = vld [vmem:[#allocation2 + $0x98] sm:$0xf]
    %v405 = vld [vmem:[#allocation2 + $0x9c] sm:$0xff]
    %v406 = vld [vmem:[#allocation2 + $0xa4] sm:$0xf]
    %v407 = vld [vmem:[#allocation2 + $0xa8] sm:$0xff]
    %v408 = vld [vmem:[#allocation2 + $0xb0] sm:$0xf]
    %v409 = vld [vmem:[#allocation2 + $0xb4] sm:$0xff]
    %v410 = vld [vmem:[#allocation2 + $0xbc] sm:$0xf]
    %v411 = vld [vmem:[#allocation2 + $0xc0] sm:$0xff]
    %v412 = vld [vmem:[#allocation2 + $0xc8] sm:$0xf]
    %v413 = vld [vmem:[#allocation2 + $0xcc] sm:$0xff]
    %v414 = vld [vmem:[#allocation2 + $0xd4] sm:$0xf]
    %v415 = vld [vmem:[#allocation2 + $0xd8] sm:$0xff]
    %v416 = vld [vmem:[#allocation2 + $0xe0] sm:$0xf]
    %v417 = vld [vmem:[#allocation2 + $0xe4] sm:$0xff]
    %v418 = vld [vmem:[#allocation2 + $0xec] sm:$0xf]
    %v419 = vld [vmem:[#allocation2 + $0xf0] sm:$0xff]
    %v420 = vld [vmem:[#allocation2 + $0xf8] sm:$0xf]
    %v421 = vld [vmem:[#allocation2 + $0xfc] sm:$0xff]
    %v422 = vld [vmem:[#allocation2 + $0x104] sm:$0xf]
    %v423 = vld [vmem:[#allocation2 + $0x108] sm:$0xff]
    %v424 = vld [vmem:[#allocation2 + $0x110] sm:$0xf]
    %v425 = vld [vmem:[#allocation2 + $0x114] sm:$0xff]
    %v426 = vld [vmem:[#allocation2 + $0x11c] sm:$0xf]
    %v427 = vld [vmem:[#allocation2 + $0x120] sm:$0xff]
    %v428 = vld [vmem:[#allocation2 + $0x128] sm:$0xf]
    %v429 = vld [vmem:[#allocation2 + $0x12c] sm:$0xff]
    %v430 = vld [vmem:[#allocation2 + $0x134] sm:$0xf]
    %v431 = vld [vmem:[#allocation2 + $0x138] sm:$0xff]
    %v432 = vld [vmem:[#allocation2 + $0x140] sm:$0xf]
    %v433 = vld [vmem:[#allocation2 + $0x144] sm:$0xff]
    %v434 = vld [vmem:[#allocation2 + $0x14c] sm:$0xf]
    %v435 = vld [vmem:[#allocation2 + $0x150] sm:$0xff]
    %v436 = vld [vmem:[#allocation2 + $0x158] sm:$0xf]
    %v437 = vld [vmem:[#allocation2 + $0x15c] sm:$0xff]
    %v438 = vld [vmem:[#allocation2 + $0x164] sm:$0xf]
    %v439 = vld [vmem:[#allocation2 + $0x168] sm:$0xff]
    %v440 = vld [vmem:[#allocation2 + $0x170] sm:$0xf]
    %v441 = vld [vmem:[#allocation2 + $0x174] sm:$0xff]
    %v442 = vld [vmem:[#allocation2 + $0x17c] sm:$0xf]
    %v443 = vld [vmem:[#allocation2 + $0x180] sm:$0xff]
    %v444 = vld [vmem:[#allocation2 + $0x188] sm:$0xf]
    %v445 = vld [vmem:[#allocation2 + $0x18c] sm:$0xff]
    %v446 = vld [vmem:[#allocation2 + $0x194] sm:$0xf]
    %v447 = vld [vmem:[#allocation2 + $0x198] sm:$0xff]
    %v448 = vld [vmem:[#allocation2 + $0x1a0] sm:$0xf]
    %v449 = vld [vmem:[#allocation2 + $0x1a4] sm:$0xff]
    %v450 = vld [vmem:[#allocation2 + $0x1ac] sm:$0xf]
    %v451 = vld [vmem:[#allocation2 + $0x1b0] sm:$0xff]
    %v452 = vld [vmem:[#allocation2 + $0x1b8] sm:$0xf]
    %v453 = vld [vmem:[#allocation2 + $0x1bc] sm:$0xff]
    %v454 = vld [vmem:[#allocation2 + $0x1c4] sm:$0xf]
    %v455 = vld [vmem:[#allocation2 + $0x1c8] sm:$0xff]
    %v456 = vld [vmem:[#allocation2 + $0x1d0] sm:$0xf]
    %v457 = vld [vmem:[#allocation2 + $0x1d4] sm:$0xff]
    %v458 = vld [vmem:[#allocation2 + $0x1dc] sm:$0xf]
    %v459 = vld [vmem:[#allocation2 + $0x1e0] sm:$0xff]
    %v460 = vld [vmem:[#allocation2 + $0x1e8] sm:$0xf]
    %v461 = vld [vmem:[#allocation2 + $0x1ec] sm:$0xff]
    %v462 = vld [vmem:[#allocation2 + $0x1f4] sm:$0xf]
    %v463 = vld [vmem:[#allocation2 + $0x1f8] sm:$0xff]
    %v464 = vld [vmem:[#allocation2 + $0x200] sm:$0xf]
    %v465 = vld [vmem:[#allocation2 + $0x204] sm:$0xff]
    %v466 = vld [vmem:[#allocation2 + $0x20c] sm:$0xf]
    %v467 = vld [vmem:[#allocation2 + $0x210] sm:$0xff]
    %v468 = vld [vmem:[#allocation2 + $0x218] sm:$0xf]
    %v469 = vld [vmem:[#allocation2 + $0x21c] sm:$0xff]
    %v470 = vld [vmem:[#allocation2 + $0x224] sm:$0xf]
    %v471 = vld [vmem:[#allocation2 + $0x228] sm:$0xff]
    %v472 = vld [vmem:[#allocation2 + $0x230] sm:$0xf]
    %v473 = vld [vmem:[#allocation2 + $0x234] sm:$0xff]
    %v474 = vld [vmem:[#allocation2 + $0x23c] sm:$0xf]
    %v475 = vld [vmem:[#allocation2 + $0x240] sm:$0xff]
    %v476 = vld [vmem:[#allocation2 + $0x248] sm:$0xf]
    %v477 = vld [vmem:[#allocation2 + $0x24c] sm:$0xff]
    %v478 = vld [vmem:[#allocation2 + $0x254] sm:$0xf]
    %v479 = vld [vmem:[%s4] sm:$0x7]
    %v481 = vlaneseq
    %v482 = vshrl.u32 %v481, 7
    %v483 = vsub.s32 0, %v482
    %v484 = vrot.slane %v479, %v483
    %v485 = vlaneseq
    %v486 = vshrl.u32 %v485, 7
    %v487 = vsub.s32 1, %v486
    %v488 = vrot.slane %v479, %v487
    %v489 = vlaneseq
    %v490 = vshrl.u32 %v489, 7
    %v491 = vsub.s32 2, %v490
    %v492 = vrot.slane %v479, %v491
    %v596 = vunpack.c.l.b16 %v379
    %v597 = vunpack.c.h.b16 %v379
    %v598 = vunpack.c.l.b16 %v380
    %v599 = vunpack.c.l.b16 %v381
    %v600 = vunpack.c.h.b16 %v381
    %v601 = vunpack.c.l.b16 %v382
    %v602 = vunpack.c.l.b16 %v383
    %v603 = vunpack.c.h.b16 %v383
    %v604 = vunpack.c.l.b16 %v384
    %v605 = vunpack.c.l.b16 %v385
    %v606 = vunpack.c.h.b16 %v385
    %v607 = vunpack.c.l.b16 %v386
    %v608 = vunpack.c.l.b16 %v387
    %v609 = vunpack.c.h.b16 %v387
    %v610 = vunpack.c.l.b16 %v388
    %v611 = vunpack.c.l.b16 %v389
    %v612 = vunpack.c.h.b16 %v389
    %v613 = vunpack.c.l.b16 %v390
    %v614 = vunpack.c.l.b16 %v391
    %v615 = vunpack.c.h.b16 %v391
    %v616 = vunpack.c.l.b16 %v392
    %v617 = vunpack.c.l.b16 %v393
    %v618 = vunpack.c.h.b16 %v393
    %v619 = vunpack.c.l.b16 %v394
    %v620 = vunpack.c.l.b16 %v395
    %v621 = vunpack.c.h.b16 %v395
    %v622 = vunpack.c.l.b16 %v396
    %v623 = vunpack.c.l.b16 %v397
    %v624 = vunpack.c.h.b16 %v397
    %v625 = vunpack.c.l.b16 %v398
    %v626 = vunpack.c.l.b16 %v399
    %v627 = vunpack.c.h.b16 %v399
    %v628 = vunpack.c.l.b16 %v400
    %v629 = vunpack.c.l.b16 %v401
    %v630 = vunpack.c.h.b16 %v401
    %v631 = vunpack.c.l.b16 %v402
    %v632 = vunpack.c.l.b16 %v403
    %v633 = vunpack.c.h.b16 %v403
    %v634 = vunpack.c.l.b16 %v404
    %v635 = vunpack.c.l.b16 %v405
    %v636 = vunpack.c.h.b16 %v405
    %v637 = vunpack.c.l.b16 %v406
    %v638 = vunpack.c.l.b16 %v407
    %v639 = vunpack.c.h.b16 %v407
    %v640 = vunpack.c.l.b16 %v408
    %v641 = vunpack.c.l.b16 %v409
    %v642 = vunpack.c.h.b16 %v409
    %v643 = vunpack.c.l.b16 %v410
    %v644 = vunpack.c.l.b16 %v411
    %v645 = vunpack.c.h.b16 %v411
    %v646 = vunpack.c.l.b16 %v412
    %v647 = vunpack.c.l.b16 %v413
    %v648 = vunpack.c.h.b16 %v413
    %v649 = vunpack.c.l.b16 %v414
    %v650 = vunpack.c.l.b16 %v415
    %v651 = vunpack.c.h.b16 %v415
    %v652 = vunpack.c.l.b16 %v416
    %v653 = vunpack.c.l.b16 %v417
    %v654 = vunpack.c.h.b16 %v417
    %v655 = vunpack.c.l.b16 %v418
    %v656 = vunpack.c.l.b16 %v419
    %v657 = vunpack.c.h.b16 %v419
    %v658 = vunpack.c.l.b16 %v420
    %v659 = vunpack.c.l.b16 %v421
    %v660 = vunpack.c.h.b16 %v421
    %v661 = vunpack.c.l.b16 %v422
    %v662 = vunpack.c.l.b16 %v423
    %v663 = vunpack.c.h.b16 %v423
    %v664 = vunpack.c.l.b16 %v424
    %v665 = vunpack.c.l.b16 %v425
    %v666 = vunpack.c.h.b16 %v425
    %v667 = vunpack.c.l.b16 %v426
    %v668 = vunpack.c.l.b16 %v427
    %v669 = vunpack.c.h.b16 %v427
    %v670 = vunpack.c.l.b16 %v428
    %v671 = vunpack.c.l.b16 %v429
    %v672 = vunpack.c.h.b16 %v429
    %v673 = vunpack.c.l.b16 %v430
    %v674 = vunpack.c.l.b16 %v431
    %v675 = vunpack.c.h.b16 %v431
    %v676 = vunpack.c.l.b16 %v432
    %v677 = vunpack.c.l.b16 %v433
    %v678 = vunpack.c.h.b16 %v433
    %v679 = vunpack.c.l.b16 %v434
    %v680 = vunpack.c.l.b16 %v435
    %v681 = vunpack.c.h.b16 %v435
    %v682 = vunpack.c.l.b16 %v436
    %v683 = vunpack.c.l.b16 %v437
    %v684 = vunpack.c.h.b16 %v437
    %v685 = vunpack.c.l.b16 %v438
    %v686 = vunpack.c.l.b16 %v439
    %v687 = vunpack.c.h.b16 %v439
    %v688 = vunpack.c.l.b16 %v440
    %v689 = vunpack.c.l.b16 %v441
    %v690 = vunpack.c.h.b16 %v441
    %v691 = vunpack.c.l.b16 %v442
    %v692 = vunpack.c.l.b16 %v443
    %v693 = vunpack.c.h.b16 %v443
    %v694 = vunpack.c.l.b16 %v444
    %v695 = vunpack.c.l.b16 %v445
    %v696 = vunpack.c.h.b16 %v445
    %v697 = vunpack.c.l.b16 %v446
    %v698 = vunpack.c.l.b16 %v447
    %v699 = vunpack.c.h.b16 %v447
    %v700 = vunpack.c.l.b16 %v448
    %v701 = vunpack.c.l.b16 %v449
    %v702 = vunpack.c.h.b16 %v449
    %v703 = vunpack.c.l.b16 %v450
    %v704 = vunpack.c.l.b16 %v451
    %v705 = vunpack.c.h.b16 %v451
    %v706 = vunpack.c.l.b16 %v452
    %v707 = vunpack.c.l.b16 %v453
    %v708 = vunpack.c.h.b16 %v453
    %v709 = vunpack.c.l.b16 %v454
    %v710 = vunpack.c.l.b16 %v455
    %v711 = vunpack.c.h.b16 %v455
    %v712 = vunpack.c.l.b16 %v456
    %v713 = vunpack.c.l.b16 %v457
    %v714 = vunpack.c.h.b16 %v457
    %v715 = vunpack.c.l.b16 %v458
    %v716 = vunpack.c.l.b16 %v459
    %v717 = vunpack.c.h.b16 %v459
    %v718 = vunpack.c.l.b16 %v460
    %v719 = vunpack.c.l.b16 %v461
    %v720 = vunpack.c.h.b16 %v461
    %v721 = vunpack.c.l.b16 %v462
    %v722 = vunpack.c.l.b16 %v463
    %v723 = vunpack.c.h.b16 %v463
    %v724 = vunpack.c.l.b16 %v464
    %v725 = vunpack.c.l.b16 %v465
    %v726 = vunpack.c.h.b16 %v465
    %v727 = vunpack.c.l.b16 %v466
    %v728 = vunpack.c.l.b16 %v467
    %v729 = vunpack.c.h.b16 %v467
    %v730 = vunpack.c.l.b16 %v468
    %v731 = vunpack.c.l.b16 %v469
    %v732 = vunpack.c.h.b16 %v469
    %v733 = vunpack.c.l.b16 %v470
    %v734 = vunpack.c.l.b16 %v471
    %v735 = vunpack.c.h.b16 %v471
    %v736 = vunpack.c.l.b16 %v472
    %v737 = vunpack.c.l.b16 %v473
    %v738 = vunpack.c.h.b16 %v473
    %v739 = vunpack.c.l.b16 %v474
    %v740 = vunpack.c.l.b16 %v475
    %v741 = vunpack.c.h.b16 %v475
    %v742 = vunpack.c.l.b16 %v476
    %v743 = vunpack.c.l.b16 %v477
    %v744 = vunpack.c.h.b16 %v477
    %v745 = vunpack.c.l.b16 %v478
    %v746 = vpack.c.b16 %v599, %v596
    %v747 = vpack.c.b16 %v600, %v597
    %v748 = vpack.c.b16 %v601, %v598
    %v749 = vpack.c.b16 %v605, %v602
    %v750 = vpack.c.b16 %v606, %v603
    %v751 = vpack.c.b16 %v607, %v604
    %v752 = vpack.c.b16 %v611, %v608
    %v753 = vpack.c.b16 %v612, %v609
    %v754 = vpack.c.b16 %v613, %v610
    %v755 = vpack.c.b16 %v617, %v614
    %v756 = vpack.c.b16 %v618, %v615
    %v757 = vpack.c.b16 %v619, %v616
    %v758 = vpack.c.b16 %v623, %v620
    %v759 = vpack.c.b16 %v624, %v621
    %v760 = vpack.c.b16 %v625, %v622
    %v761 = vpack.c.b16 %v629, %v626
    %v762 = vpack.c.b16 %v630, %v627
    %v763 = vpack.c.b16 %v631, %v628
    %v764 = vpack.c.b16 %v635, %v632
    %v765 = vpack.c.b16 %v636, %v633
    %v766 = vpack.c.b16 %v637, %v634
    %v767 = vpack.c.b16 %v641, %v638
    %v768 = vpack.c.b16 %v642, %v639
    %v769 = vpack.c.b16 %v643, %v640
    %v770 = vpack.c.b16 %v647, %v644
    %v771 = vpack.c.b16 %v648, %v645
    %v772 = vpack.c.b16 %v649, %v646
    %v773 = vpack.c.b16 %v653, %v650
    %v774 = vpack.c.b16 %v654, %v651
    %v775 = vpack.c.b16 %v655, %v652
    %v776 = vpack.c.b16 %v659, %v656
    %v777 = vpack.c.b16 %v660, %v657
    %v778 = vpack.c.b16 %v661, %v658
    %v779 = vpack.c.b16 %v665, %v662
    %v780 = vpack.c.b16 %v666, %v663
    %v781 = vpack.c.b16 %v667, %v664
    %v782 = vpack.c.b16 %v671, %v668
    %v783 = vpack.c.b16 %v672, %v669
    %v784 = vpack.c.b16 %v673, %v670
    %v785 = vpack.c.b16 %v677, %v674
    %v786 = vpack.c.b16 %v678, %v675
    %v787 = vpack.c.b16 %v679, %v676
    %v788 = vpack.c.b16 %v683, %v680
    %v789 = vpack.c.b16 %v684, %v681
    %v790 = vpack.c.b16 %v685, %v682
    %v791 = vpack.c.b16 %v689, %v686
    %v792 = vpack.c.b16 %v690, %v687
    %v793 = vpack.c.b16 %v691, %v688
    %v794 = vpack.c.b16 %v695, %v692
    %v795 = vpack.c.b16 %v696, %v693
    %v796 = vpack.c.b16 %v697, %v694
    %v797 = vpack.c.b16 %v701, %v698
    %v798 = vpack.c.b16 %v702, %v699
    %v799 = vpack.c.b16 %v703, %v700
    %v800 = vpack.c.b16 %v707, %v704
    %v801 = vpack.c.b16 %v708, %v705
    %v802 = vpack.c.b16 %v709, %v706
    %v803 = vpack.c.b16 %v713, %v710
    %v804 = vpack.c.b16 %v714, %v711
    %v805 = vpack.c.b16 %v715, %v712
    %v806 = vpack.c.b16 %v719, %v716
    %v807 = vpack.c.b16 %v720, %v717
    %v808 = vpack.c.b16 %v721, %v718
    %v809 = vpack.c.b16 %v725, %v722
    %v810 = vpack.c.b16 %v726, %v723
    %v811 = vpack.c.b16 %v727, %v724
    %v812 = vpack.c.b16 %v731, %v728
    %v813 = vpack.c.b16 %v732, %v729
    %v814 = vpack.c.b16 %v733, %v730
    %v815 = vpack.c.b16 %v737, %v734
    %v816 = vpack.c.b16 %v738, %v735
    %v817 = vpack.c.b16 %v739, %v736
    %v818 = vpack.c.b16 %v743, %v740
    %v819 = vpack.c.b16 %v744, %v741
    %v820 = vpack.c.b16 %v745, %v742
    %v897 = vsel %vm345, %v378, 0
    %899 = vmatprep.subr.bf16.mxu0 %v768
    %900 = vmatpush1.bf16.msra.mxu0 %v767
    %901 = vmatprep.subr.bf16.mxu0 %v765
    %902 = vmatpush1.bf16.msra.mxu0 %v764
    %903 = vmatprep.subr.bf16.mxu0 %v762
    %904 = vmatpush1.bf16.msra.mxu0 %v761
    %905 = vmatprep.subr.bf16.mxu0 %v759
    %906 = vmatpush1.bf16.msra.mxu0 %v758
    %907 = vmatprep.subr.bf16.mxu0 %v756
    %908 = vmatpush1.bf16.msra.mxu0 %v755
    %909 = vmatprep.subr.bf16.mxu0 %v753
    %910 = vmatpush1.bf16.msra.mxu0 %v752
    %911 = vmatprep.subr.bf16.mxu0 %v750
    %912 = vmatpush1.bf16.msra.mxu0 %v749
    %913 = vmatprep.subr.bf16.mxu0 %v747
    %914 = vmatpush1.bf16.msra.mxu0 %v746
    %915 = vmatprep.subr.bf16.mxu0 %v792
    %916 = vmatpush2.bf16.msra.mxu0 %v791
    %917 = vmatprep.subr.bf16.mxu0 %v789
    %918 = vmatpush2.bf16.msra.mxu0 %v788
    %919 = vmatprep.subr.bf16.mxu0 %v786
    %920 = vmatpush2.bf16.msra.mxu0 %v785
    %921 = vmatprep.subr.bf16.mxu0 %v783
    %922 = vmatpush2.bf16.msra.mxu0 %v782
    %923 = vmatprep.subr.bf16.mxu0 %v780
    %924 = vmatpush2.bf16.msra.mxu0 %v779
    %925 = vmatprep.subr.bf16.mxu0 %v777
    %926 = vmatpush2.bf16.msra.mxu0 %v776
    %927 = vmatprep.subr.bf16.mxu0 %v774
    %928 = vmatpush2.bf16.msra.mxu0 %v773
    %929 = vmatprep.subr.bf16.mxu0 %v771
    %930 = vmatpush2.bf16.msra.mxu0 %v770
    %931 = vmatprep.mubr.bf16.mxu0 %v376
    %932 = vmatmul.mubr.bf16.gmra.mxu0 %v375
    %v933 = vpop.f32.mrf.mxu0
    %v934 = vadd.f32 %v484, %v933
    %v935 = vpop.f32.mrf.mxu0
    %v936 = vadd.f32 %v488, %v935
    %v937 = vpop.f32.mrf.mxu0
    %v938 = vpop.f32.mrf.mxu0
    %939 = vdwg.mxu0
    %940 = vmatprep.subr.bf16.mxu0 %v816
    %941 = vmatpush1.bf16.msra.mxu0 %v815
    %942 = vmatprep.subr.bf16.mxu0 %v813
    %943 = vmatpush1.bf16.msra.mxu0 %v812
    %944 = vmatprep.subr.bf16.mxu0 %v810
    %945 = vmatpush1.bf16.msra.mxu0 %v809
    %946 = vmatprep.subr.bf16.mxu0 %v807
    %947 = vmatpush1.bf16.msra.mxu0 %v806
    %948 = vmatprep.subr.bf16.mxu0 %v804
    %949 = vmatpush1.bf16.msra.mxu0 %v803
    %950 = vmatprep.subr.bf16.mxu0 %v801
    %951 = vmatpush1.bf16.msra.mxu0 %v800
    %952 = vmatprep.subr.bf16.mxu0 %v798
    %953 = vmatpush1.bf16.msra.mxu0 %v797
    %954 = vmatprep.subr.bf16.mxu0 %v795
    %955 = vmatpush1.bf16.msra.mxu0 %v794
    %956 = vmatprep.subr.bf16.mxu0 0
    %957 = vmatpush2.bf16.msra.mxu0 0
    %958 = vmatprep.subr.bf16.mxu0 0
    %959 = vmatpush2.bf16.msra.mxu0 0
    %960 = vmatprep.subr.bf16.mxu0 0
    %961 = vmatpush2.bf16.msra.mxu0 0
    %962 = vmatprep.subr.bf16.mxu0 0
    %963 = vmatpush2.bf16.msra.mxu0 0
    %964 = vmatprep.subr.bf16.mxu0 0
    %965 = vmatpush2.bf16.msra.mxu0 0
    %966 = vmatprep.subr.bf16.mxu0 0
    %967 = vmatpush2.bf16.msra.mxu0 0
    %968 = vmatprep.subr.bf16.mxu0 0
    %969 = vmatpush2.bf16.msra.mxu0 0
    %970 = vmatprep.subr.bf16.mxu0 %v819
    %971 = vmatpush2.bf16.msra.mxu0 %v818
    %972 = vmatprep.mubr.bf16.mxu0 %v897
    %973 = vmatmul.mubr.bf16.gmra.mxu0 %v377
    %v974 = vpop.f32.mrf.mxu0
    %v975 = vadd.f32 %v934, %v974
    %v976 = vpop.f32.mrf.mxu0
    %v977 = vadd.f32 %v936, %v976
    %v978 = vpop.f32.mrf.mxu0
    %v979 = vpop.f32.mrf.mxu0
    %980 = vdwg.mxu0
    %981 = vmatprep.subr.bf16.mxu0 0
    %982 = vmatpush1.bf16.msra.mxu0 %v769
    %983 = vmatprep.subr.bf16.mxu0 0
    %984 = vmatpush1.bf16.msra.mxu0 %v766
    %985 = vmatprep.subr.bf16.mxu0 0
    %986 = vmatpush1.bf16.msra.mxu0 %v763
    %987 = vmatprep.subr.bf16.mxu0 0
    %988 = vmatpush1.bf16.msra.mxu0 %v760
    %989 = vmatprep.subr.bf16.mxu0 0
    %990 = vmatpush1.bf16.msra.mxu0 %v757
    %991 = vmatprep.subr.bf16.mxu0 0
    %992 = vmatpush1.bf16.msra.mxu0 %v754
    %993 = vmatprep.subr.bf16.mxu0 0
    %994 = vmatpush1.bf16.msra.mxu0 %v751
    %995 = vmatprep.subr.bf16.mxu0 0
    %996 = vmatpush1.bf16.msra.mxu0 %v748
    %997 = vmatprep.subr.bf16.mxu0 0
    %998 = vmatpush2.bf16.msra.mxu0 %v793
    %999 = vmatprep.subr.bf16.mxu0 0
    %1000 = vmatpush2.bf16.msra.mxu0 %v790
    %1001 = vmatprep.subr.bf16.mxu0 0
    %1002 = vmatpush2.bf16.msra.mxu0 %v787
    %1003 = vmatprep.subr.bf16.mxu0 0
    %1004 = vmatpush2.bf16.msra.mxu0 %v784
    %1005 = vmatprep.subr.bf16.mxu0 0
    %1006 = vmatpush2.bf16.msra.mxu0 %v781
    %1007 = vmatprep.subr.bf16.mxu0 0
    %1008 = vmatpush2.bf16.msra.mxu0 %v778
    %1009 = vmatprep.subr.bf16.mxu0 0
    %1010 = vmatpush2.bf16.msra.mxu0 %v775
    %1011 = vmatprep.subr.bf16.mxu0 0
    %1012 = vmatpush2.bf16.msra.mxu0 %v772
    %1013 = vmatprep.mubr.bf16.mxu0 %v376
    %1014 = vmatmul.mubr.bf16.gmra.mxu0 %v375
    %v1015 = vpop.f32.mrf.mxu0
    %v1016 = vadd.f32 %v492, %v1015
    %v1017 = vpop.f32.mrf.mxu0
    %v1018 = vpop.f32.mrf.mxu0
    %v1019 = vpop.f32.mrf.mxu0
    %1020 = vdwg.mxu0
    %1021 = vmatprep.subr.bf16.mxu0 0
    %1022 = vmatpush1.bf16.msra.mxu0 %v817
    %1023 = vmatprep.subr.bf16.mxu0 0
    %1024 = vmatpush1.bf16.msra.mxu0 %v814
    %1025 = vmatprep.subr.bf16.mxu0 0
    %1026 = vmatpush1.bf16.msra.mxu0 %v811
    %1027 = vmatprep.subr.bf16.mxu0 0
    %1028 = vmatpush1.bf16.msra.mxu0 %v808
    %1029 = vmatprep.subr.bf16.mxu0 0
    %1030 = vmatpush1.bf16.msra.mxu0 %v805
    %1031 = vmatprep.subr.bf16.mxu0 0
    %1032 = vmatpush1.bf16.msra.mxu0 %v802
    %1033 = vmatprep.subr.bf16.mxu0 0
    %1034 = vmatpush1.bf16.msra.mxu0 %v799
    %1035 = vmatprep.subr.bf16.mxu0 0
    %1036 = vmatpush1.bf16.msra.mxu0 %v796
    %1037 = vmatprep.subr.bf16.mxu0 0
    %1038 = vmatpush2.bf16.msra.mxu0 0
    %1039 = vmatprep.subr.bf16.mxu0 0
    %1040 = vmatpush2.bf16.msra.mxu0 0
    %1041 = vmatprep.subr.bf16.mxu0 0
    %1042 = vmatpush2.bf16.msra.mxu0 0
    %1043 = vmatprep.subr.bf16.mxu0 0
    %1044 = vmatpush2.bf16.msra.mxu0 0
    %1045 = vmatprep.subr.bf16.mxu0 0
    %1046 = vmatpush2.bf16.msra.mxu0 0
    %1047 = vmatprep.subr.bf16.mxu0 0
    %1048 = vmatpush2.bf16.msra.mxu0 0
    %1049 = vmatprep.subr.bf16.mxu0 0
    %1050 = vmatpush2.bf16.msra.mxu0 0
    %1051 = vmatprep.subr.bf16.mxu0 0
    %1052 = vmatpush2.bf16.msra.mxu0 %v820
    %1053 = vmatprep.mubr.bf16.mxu0 %v897
    %1054 = vmatmul.mubr.bf16.gmra.mxu0 %v377
    %v1055 = vpop.f32.mrf.mxu0
    %v1056 = vadd.f32 %v1016, %v1055
    %v1057 = vpop.f32.mrf.mxu0
    %v1058 = vpop.f32.mrf.mxu0
    %v1059 = vpop.f32.mrf.mxu0
    %1060 = vdwg.mxu0
    %v1061 = vmax.f32 %v975, 0.0
    %v1062 = vmax.f32 %v977, 0.0
    %v1063 = vmax.f32 %v1056, 0.0
    %v1064 = vadd.f32 %v1061, %v1062
    %vm1065 = vcmask 359424
    %v1066 = vsel %vm1065, %v1063, 0.0
    %v1067 = vadd.f32 %v1064, %v1066
    %1068 = vadd.xlane.f32.xlu0 %v1067
    %v1069 = vpop.xlane.xlu0 %1068
    %v1070 = vmul.f32 %v1069, 0.0033333334
    %v1071 = vmul.f32 %v1061, %v1061
    %v1072 = vmul.f32 %v1062, %v1062
    %v1073 = vmul.f32 %v1063, %v1063
    %v1074 = vadd.f32 %v1071, %v1072
    %v1075 = vsel %vm1065, %v1073, 0.0
    %v1076 = vadd.f32 %v1074, %v1075
    %1077 = vadd.xlane.f32.xlu0 %v1076
    %v1078 = vpop.xlane.xlu0 %1077
    %v1079 = vmul.f32 %v1078, 0.0033333334
    %v1080 = vmul.f32 %v1070, %v1070
    %v1081 = vsub.f32 %v1079, %v1080
    %v1082 = vmax.f32 %v1081, 0.0
    %v1083 = vsub.f32 %v1061, %v1070
    %v1084 = vsub.f32 %v1062, %v1070
    %v1085 = vsub.f32 %v1063, %v1070
    %v1086 = vadd.f32 %v1082, 1e-05
    %v1087 = vrsqrt.pop %v1086
    %v1088 = vmul.f32 %v1083, %v1087
    %v1089 = vmul.f32 %v1084, %v1087
    %v1090 = vmul.f32 %v1085, %v1087
    %v1091 = vpack.c.bf16 %v1088, %v1088
    %v1092 = vpack.c.bf16 %v1089, %v1089
    %v1093 = vpack.c.bf16 %v1090, %v1090
    %v1094 = vld [vmem:[%s5] sm:$0xf]
    %v1095 = vld [vmem:[%s5 + $0x4] sm:$0xf]
    %v1096 = vld [vmem:[%s5 + $0x8] sm:$0xf]
    %v1097 = vld [vmem:[%s5 + $0xc] sm:$0xf]
    %v1098 = vld [vmem:[%s5 + $0x10] sm:$0xf]
    %v1099 = vld [vmem:[%s5 + $0x14] sm:$0xf]
    %v1100 = vld [vmem:[%s5 + $0x18] sm:$0xf]
    %v1101 = vld [vmem:[%s5 + $0x1c] sm:$0xf]
    %v1102 = vld [vmem:[%s5 + $0x20] sm:$0xf]
    %v1103 = vld [vmem:[%s5 + $0x24] sm:$0xf]
    %v1104 = vld [vmem:[%s5 + $0x28] sm:$0xf]
    %v1105 = vld [vmem:[%s5 + $0x2c] sm:$0xf]
    %v1106 = vld [vmem:[%s5 + $0x30] sm:$0xf]
    %v1107 = vld [vmem:[%s5 + $0x34] sm:$0xf]
    %v1108 = vld [vmem:[%s5 + $0x38] sm:$0xf]
    %v1109 = vld [vmem:[%s5 + $0x3c] sm:$0xf]
    %v1110 = vld [vmem:[%s5 + $0x40] sm:$0xf]
    %v1111 = vld [vmem:[%s5 + $0x44] sm:$0xf]
    %v1112 = vld [vmem:[%s5 + $0x48] sm:$0xf]
    %v1113 = vld [vmem:[%s5 + $0x4c] sm:$0xf]
    %v1114 = vld [vmem:[%s5 + $0x50] sm:$0xf]
    %v1115 = vld [vmem:[%s5 + $0x54] sm:$0xf]
    %v1116 = vld [vmem:[%s5 + $0x58] sm:$0xf]
    %v1117 = vld [vmem:[%s5 + $0x5c] sm:$0xf]
    %v1118 = vld [vmem:[%s5 + $0x60] sm:$0xf]
    %v1119 = vld [vmem:[%s5 + $0x64] sm:$0xf]
    %v1120 = vld [vmem:[%s5 + $0x68] sm:$0xf]
    %v1121 = vld [vmem:[%s5 + $0x6c] sm:$0xf]
    %v1122 = vld [vmem:[%s5 + $0x70] sm:$0xf]
    %v1123 = vld [vmem:[%s5 + $0x74] sm:$0xf]
    %v1124 = vld [vmem:[%s5 + $0x78] sm:$0xf]
    %v1125 = vld [vmem:[%s5 + $0x7c] sm:$0xf]
    %v1126 = vld [vmem:[%s5 + $0x80] sm:$0xf]
    %v1127 = vld [vmem:[%s5 + $0x84] sm:$0xf]
    %v1128 = vld [vmem:[%s5 + $0x88] sm:$0xf]
    %v1129 = vld [vmem:[%s5 + $0x8c] sm:$0xf]
    %v1130 = vld [vmem:[%s5 + $0x90] sm:$0xf]
    %v1131 = vld [vmem:[%s5 + $0x94] sm:$0x3]
    %v1132 = vld [vmem:[%s6] sm:$0x1]
    %v1134 = vlaneseq
    %v1135 = vshrl.u32 %v1134, 7
    %v1136 = vsub.s32 0, %v1135
    %v1137 = vrot.slane %v1132, %v1136
    %v1177 = vunpack.c.l.b16 %v1094
    %v1178 = vunpack.c.l.b16 %v1095
    %v1179 = vunpack.c.l.b16 %v1096
    %v1180 = vunpack.c.l.b16 %v1097
    %v1181 = vunpack.c.l.b16 %v1098
    %v1182 = vunpack.c.l.b16 %v1099
    %v1183 = vunpack.c.l.b16 %v1100
    %v1184 = vunpack.c.l.b16 %v1101
    %v1185 = vunpack.c.l.b16 %v1102
    %v1186 = vunpack.c.l.b16 %v1103
    %v1187 = vunpack.c.l.b16 %v1104
    %v1188 = vunpack.c.l.b16 %v1105
    %v1189 = vunpack.c.l.b16 %v1106
    %v1190 = vunpack.c.l.b16 %v1107
    %v1191 = vunpack.c.l.b16 %v1108
    %v1192 = vunpack.c.l.b16 %v1109
    %v1193 = vunpack.c.l.b16 %v1110
    %v1194 = vunpack.c.l.b16 %v1111
    %v1195 = vunpack.c.l.b16 %v1112
    %v1196 = vunpack.c.l.b16 %v1113
    %v1197 = vunpack.c.l.b16 %v1114
    %v1198 = vunpack.c.l.b16 %v1115
    %v1199 = vunpack.c.l.b16 %v1116
    %v1200 = vunpack.c.l.b16 %v1117
    %v1201 = vunpack.c.l.b16 %v1118
    %v1202 = vunpack.c.l.b16 %v1119
    %v1203 = vunpack.c.l.b16 %v1120
    %v1204 = vunpack.c.l.b16 %v1121
    %v1205 = vunpack.c.l.b16 %v1122
    %v1206 = vunpack.c.l.b16 %v1123
    %v1207 = vunpack.c.l.b16 %v1124
    %v1208 = vunpack.c.l.b16 %v1125
    %v1209 = vunpack.c.l.b16 %v1126
    %v1210 = vunpack.c.l.b16 %v1127
    %v1211 = vunpack.c.l.b16 %v1128
    %v1212 = vunpack.c.l.b16 %v1129
    %v1213 = vunpack.c.l.b16 %v1130
    %v1214 = vunpack.c.l.b16 %v1131
    %v1215 = vpack.c.b16 %v1178, %v1177
    %v1216 = vpack.c.b16 %v1180, %v1179
    %v1217 = vpack.c.b16 %v1182, %v1181
    %v1218 = vpack.c.b16 %v1184, %v1183
    %v1219 = vpack.c.b16 %v1186, %v1185
    %v1220 = vpack.c.b16 %v1188, %v1187
    %v1221 = vpack.c.b16 %v1190, %v1189
    %v1222 = vpack.c.b16 %v1192, %v1191
    %v1223 = vpack.c.b16 %v1194, %v1193
    %v1224 = vpack.c.b16 %v1196, %v1195
    %v1225 = vpack.c.b16 %v1198, %v1197
    %v1226 = vpack.c.b16 %v1200, %v1199
    %v1227 = vpack.c.b16 %v1202, %v1201
    %v1228 = vpack.c.b16 %v1204, %v1203
    %v1229 = vpack.c.b16 %v1206, %v1205
    %v1230 = vpack.c.b16 %v1208, %v1207
    %v1231 = vpack.c.b16 %v1210, %v1209
    %v1232 = vpack.c.b16 %v1212, %v1211
    %v1233 = vpack.c.b16 %v1214, %v1213
    %v1253 = vsel %vm1065, %v1093, 0
    %vm1255 = vcmask 1045504
    %v1257 = vsel %vm1255, %v1233, 0
    %1259 = vmatprep.subr.bf16.mxu0 0
    %1260 = vmatpush1.bf16.msra.mxu0 %v1222
    %1261 = vmatprep.subr.bf16.mxu0 0
    %1262 = vmatpush1.bf16.msra.mxu0 %v1221
    %1263 = vmatprep.subr.bf16.mxu0 0
    %1264 = vmatpush1.bf16.msra.mxu0 %v1220
    %1265 = vmatprep.subr.bf16.mxu0 0
    %1266 = vmatpush1.bf16.msra.mxu0 %v1219
    %1267 = vmatprep.subr.bf16.mxu0 0
    %1268 = vmatpush1.bf16.msra.mxu0 %v1218
    %1269 = vmatprep.subr.bf16.mxu0 0
    %1270 = vmatpush1.bf16.msra.mxu0 %v1217
    %1271 = vmatprep.subr.bf16.mxu0 0
    %1272 = vmatpush1.bf16.msra.mxu0 %v1216
    %1273 = vmatprep.subr.bf16.mxu0 0
    %1274 = vmatpush1.bf16.msra.mxu0 %v1215
    %1275 = vmatprep.subr.bf16.mxu0 0
    %1276 = vmatpush2.bf16.msra.mxu0 %v1230
    %1277 = vmatprep.subr.bf16.mxu0 0
    %1278 = vmatpush2.bf16.msra.mxu0 %v1229
    %1279 = vmatprep.subr.bf16.mxu0 0
    %1280 = vmatpush2.bf16.msra.mxu0 %v1228
    %1281 = vmatprep.subr.bf16.mxu0 0
    %1282 = vmatpush2.bf16.msra.mxu0 %v1227
    %1283 = vmatprep.subr.bf16.mxu0 0
    %1284 = vmatpush2.bf16.msra.mxu0 %v1226
    %1285 = vmatprep.subr.bf16.mxu0 0
    %1286 = vmatpush2.bf16.msra.mxu0 %v1225
    %1287 = vmatprep.subr.bf16.mxu0 0
    %1288 = vmatpush2.bf16.msra.mxu0 %v1224
    %1289 = vmatprep.subr.bf16.mxu0 0
    %1290 = vmatpush2.bf16.msra.mxu0 %v1223
    %1291 = vmatprep.mubr.bf16.mxu0 %v1092
    %1292 = vmatmul.mubr.bf16.gmra.mxu0 %v1091
    %v1293 = vpop.f32.mrf.mxu0
    %v1294 = vadd.f32 %v1137, %v1293
    %v1295 = vpop.f32.mrf.mxu0
    %v1296 = vpop.f32.mrf.mxu0
    %v1297 = vpop.f32.mrf.mxu0
    %1298 = vdwg.mxu0
    %1299 = vmatprep.subr.bf16.mxu0 0
    %1300 = vmatpush1.bf16.msra.mxu0 0
    %1301 = vmatprep.subr.bf16.mxu0 0
    %1302 = vmatpush1.bf16.msra.mxu0 0
    %1303 = vmatprep.subr.bf16.mxu0 0
    %1304 = vmatpush1.bf16.msra.mxu0 0
    %1305 = vmatprep.subr.bf16.mxu0 0
    %1306 = vmatpush1.bf16.msra.mxu0 0
    %1307 = vmatprep.subr.bf16.mxu0 0
    %1308 = vmatpush1.bf16.msra.mxu0 0
    %1309 = vmatprep.subr.bf16.mxu0 0
    %1310 = vmatpush1.bf16.msra.mxu0 %v1257
    %1311 = vmatprep.subr.bf16.mxu0 0
    %1312 = vmatpush1.bf16.msra.mxu0 %v1232
    %1313 = vmatprep.subr.bf16.mxu0 0
    %1314 = vmatpush1.bf16.msra.mxu0 %v1231
    %1315 = vmatprep.subr.bf16.mxu0 0
    %1316 = vmatpush2.bf16.msra.mxu0 0
    %1317 = vmatprep.subr.bf16.mxu0 0
    %1318 = vmatpush2.bf16.msra.mxu0 0
    %1319 = vmatprep.subr.bf16.mxu0 0
    %1320 = vmatpush2.bf16.msra.mxu0 0
    %1321 = vmatprep.subr.bf16.mxu0 0
    %1322 = vmatpush2.bf16.msra.mxu0 0
    %1323 = vmatprep.subr.bf16.mxu0 0
    %1324 = vmatpush2.bf16.msra.mxu0 0
    %1325 = vmatprep.subr.bf16.mxu0 0
    %1326 = vmatpush2.bf16.msra.mxu0 0
    %1327 = vmatprep.subr.bf16.mxu0 0
    %1328 = vmatpush2.bf16.msra.mxu0 0
    %1329 = vmatprep.subr.bf16.mxu0 0
    %1330 = vmatpush2.bf16.msra.mxu0 0
    %1331 = vmatprep.mubr.bf16.mxu0 0
    %1332 = vmatmul.mubr.bf16.gmra.mxu0 %v1253
    %v1333 = vpop.f32.mrf.mxu0
    %v1334 = vadd.f32 %v1294, %v1333
    %v1335 = vpop.f32.mrf.mxu0
    %v1336 = vpop.f32.mrf.mxu0
    %v1337 = vpop.f32.mrf.mxu0
    %1338 = vdwg.mxu0
    %v1339 = vtanh.pop %v1334
    %v1340 = vmul.f32 %v1339, 2.0
    %1341 = vst [vmem:[#allocation5] sm:$0xff] %v1340
    // Predicated region
    $region34: #{tpu_custom_call.1} parent=1 // pred_check
      _
    $region35: #{tpu_custom_call.1} parent=1 // pred_check_branch
      %1343 = sbr.rel (0) target = $region37
    $region36: #{tpu_custom_call.1} parent=1 // pred_region
      %s1345 = ssub.s32 128, 128
      %1346 = vsyncadd [#allocation4], %s1345
      %s1348 = sshll.u32 [#allocation5], 4
      %s1349 = int_to_ptr.vmem [resolvable:$true] %s1348
      %1351 = dma.vmem_to_hbm [thread:$0]  %s1349, 128, %s7, [#allocation4]
    $region37: #{tpu_custom_call.1} parent=1 // pred_fallthru
      _
    // Predicated region
    $region38: #{tpu_custom_call.1} parent=1 // pred_check
      _
    $region39: #{tpu_custom_call.1} parent=1 // pred_check_branch
      %1353 = sbr.rel (0) target = $region41
    $region40: #{tpu_custom_call.1} parent=1 // pred_region
      %1354 = dma.done [#allocation4], 128
    $region41: #{tpu_custom_call.1} parent=1 // pred_fallthru
      _
    %1355 = vsyncpa [#allocation3], 1
    %1356 = vsyncpa [#allocation4], 1

</llo_original>
